<compile_context>
chip_gen: v5e
topology: v5e:2x2
jax: 0.10.0
libtpu: 0.0.40
codegen_flags: <defaults>
</compile_context>

<pallas_src>
import jax
import jax.numpy as jnp
from jax.experimental import pallas as pl
from jax.experimental.pallas import tpu as pltpu  # noqa: F401  (TPU backend)

# Model hyperparameters (small, consistent with the module's forward).
BATCH = 8
INPUT_SIZE = 16
HIDDEN_SIZE = 32
OUTPUT_SIZE = 8
UB = 2.5          # the `ub` scale factor applied after the stack
NUM_LAYERS = 4


def _mlp_kernel(x_ref, w_ref, b_ref, o_ref):
    """4x (matmul + bias + ReLU), UB pre-folded into layer 4.

    x_ref: [B, 16]          raw input (no padding)
    w_ref: [4, 32, 32]      packed, zero-padded weights (layer-major, x@W layout)
    b_ref: [4, 1, 32]       packed, zero-padded biases
    o_ref: [B, 8]           output (valid lanes only)
    """
    # Layer 1: contract against the valid rows of the layer-1 weight block
    # (static ref slice; padded rows are zero anyway, so this is exact).
    h = jnp.dot(x_ref[...], w_ref[0, :INPUT_SIZE, :],
                preferred_element_type=jnp.float32) + b_ref[0]
    h = jnp.maximum(h, 0.0)
    # Layers 2..4: clean [B,32] x [32,32] MXU passes (static unroll).
    for i in range(1, NUM_LAYERS):
        h = jnp.dot(h, w_ref[i], preferred_element_type=jnp.float32) + b_ref[i]
        h = jnp.maximum(h, 0.0)
    # UB already folded into layer-4 params; just store the valid output lanes.
    o_ref[...] = h[:, :OUTPUT_SIZE].astype(o_ref.dtype)


def neural_network_forward(x, w_slab, b_slab):
    """Run the fused MLP kernel.  x: [B, INPUT_SIZE] f32; slabs from pack_params."""
    B = x.shape[0]
    flops = 2 * B * (INPUT_SIZE * HIDDEN_SIZE
                     + 2 * HIDDEN_SIZE * HIDDEN_SIZE
                     + HIDDEN_SIZE * OUTPUT_SIZE)
    bytes_accessed = (x.size + w_slab.size + b_slab.size + B * OUTPUT_SIZE) * 4

    return pl.pallas_call(
        _mlp_kernel,
        out_shape=jax.ShapeDtypeStruct((B, OUTPUT_SIZE), jnp.float32),
        grid=(),  # single invocation; ~20 KiB working set lives in VMEM
        in_specs=[
            pl.BlockSpec((B, INPUT_SIZE), lambda: (0, 0)),
            pl.BlockSpec((NUM_LAYERS, HIDDEN_SIZE, HIDDEN_SIZE),
                         lambda: (0, 0, 0)),
            pl.BlockSpec((NUM_LAYERS, 1, HIDDEN_SIZE), lambda: (0, 0, 0)),
        ],
        out_specs=pl.BlockSpec((B, OUTPUT_SIZE), lambda: (0, 0)),
        cost_estimate=pl.CostEstimate(flops=flops, transcendentals=0,
                                      bytes_accessed=bytes_accessed),
    )(x, w_slab, b_slab)


def init_params(key):
    """Deterministic parameter init mimicking nn.Linear's U(-1/sqrt(fan_in), +)."""
    dims = [(INPUT_SIZE, HIDDEN_SIZE),
            (HIDDEN_SIZE, HIDDEN_SIZE),
            (HIDDEN_SIZE, HIDDEN_SIZE),
            (HIDDEN_SIZE, OUTPUT_SIZE)]
    params = {}
    for i, (fan_in, fan_out) in enumerate(dims, start=1):
        key, kw, kb = jax.random.split(key, 3)
        bound = 1.0 / (fan_in ** 0.5)
        # Stored as [in, out] (PyTorch weight.T) so the kernel does x @ W.
        params[f"w{i}"] = jax.random.uniform(
            kw, (fan_in, fan_out), jnp.float32, minval=-bound, maxval=bound)
        params[f"b{i}"] = jax.random.uniform(
            kb, (1, fan_out), jnp.float32, minval=-bound, maxval=bound)
    return params


def pack_params(params):
    """One-time prep: pack w1..b4 into two zero-padded 32-wide slabs.

    UB is folded into layer 4 (exact: max(z,0)*UB == max(UB*z,0) for UB > 0).
    """
    w_slab = jnp.zeros((NUM_LAYERS, HIDDEN_SIZE, HIDDEN_SIZE), jnp.float32)
    b_slab = jnp.zeros((NUM_LAYERS, 1, HIDDEN_SIZE), jnp.float32)
    for i in range(NUM_LAYERS):
        w = params[f"w{i + 1}"]
        b = params[f"b{i + 1}"]
        if i == NUM_LAYERS - 1:
            w = w * UB
            b = b * UB
        w_slab = w_slab.at[i, : w.shape[0], : w.shape[1]].set(w)
        b_slab = b_slab.at[i, :, : b.shape[1]].set(b)
    return w_slab, b_slab


def reference_forward(x, params):
    """Pure-JAX reference matching the PyTorch module semantics
    (Linear+ReLU x4, then *ub — the Sequential ends with the activation)."""
    h = x
    for i in range(1, NUM_LAYERS + 1):
        h = jnp.maximum(h @ params[f"w{i}"] + params[f"b{i}"], 0.0)
    return h * UB


# TODO(synk): if batch grows to hundreds of rows, add a "parallel" batch grid
# axis (>=128-row activation tiles, weight index_map held at (0,0,0) so the
# slab stays VMEM-resident) to engage v7x's second TensorCore; consider bf16
# weights on v6e/v7x at that point (relax the allclose tolerance).

if __name__ == "__main__":
    key = jax.random.PRNGKey(0)
    key, kx = jax.random.split(key)
    x = jax.random.normal(kx, (BATCH, INPUT_SIZE), jnp.float32)

    params = init_params(key)
    w_slab, b_slab = pack_params(params)

    out = neural_network_forward(x, w_slab, b_slab)
    out = jax.block_until_ready(out)

    ref = reference_forward(x, params)
    assert out.shape == (BATCH, OUTPUT_SIZE)
    assert jnp.allclose(out, ref, atol=1e-5, rtol=1e-5), "mismatch vs reference"

    print("KERNEL_OK")
</pallas_src>

<mosaic_0001>
module attributes {stable_mosaic.version = 11 : i64} {
  func.func @_mlp_kernel(%arg0: memref<8x16xf32, #tpu.memory_space<vmem>>, %arg1: memref<4x32x32xf32, #tpu.memory_space<vmem>>, %arg2: memref<4x1x32xf32, #tpu.memory_space<vmem>>, %arg3: memref<8x8xf32, #tpu.memory_space<vmem>>) attributes {dimension_semantics = [], scalar_prefetch = 0 : i64, scratch_operands = 0 : i64, tpu.core_type = #tpu.core_type<tc>} {
    %c0 = arith.constant 0 : index
    %c0_0 = arith.constant 0 : index
    %0 = vector.load %arg0[%c0, %c0_0] : memref<8x16xf32, #tpu.memory_space<vmem>>, vector<8x16xf32>
    %c0_1 = arith.constant 0 : index
    %c0_2 = arith.constant 0 : index
    %c0_3 = arith.constant 0 : index
    %1 = vector.load %arg1[%c0_1, %c0_2, %c0_3] : memref<4x32x32xf32, #tpu.memory_space<vmem>>, vector<1x16x32xf32>
    %2 = vector.shape_cast %1 : vector<1x16x32xf32> to vector<16x32xf32>
    %cst = arith.constant dense<0.000000e+00> : vector<8x32xf32>
    %3 = tpu.matmul %0, %2, %cst {dimension_numbers = #tpu.dot_dimension_numbers<[1], [0], [0], [1], [0, 0, 1, 1], [], []>} : vector<8x16xf32>, vector<16x32xf32>, vector<8x32xf32> -> vector<8x32xf32>
    %c0_4 = arith.constant 0 : index
    %c0_5 = arith.constant 0 : index
    %c0_6 = arith.constant 0 : index
    %4 = vector.load %arg2[%c0_4, %c0_5, %c0_6] : memref<4x1x32xf32, #tpu.memory_space<vmem>>, vector<1x1x32xf32>
    %5 = vector.shape_cast %4 : vector<1x1x32xf32> to vector<1x32xf32>
    %6 = vector.broadcast %5 : vector<1x32xf32> to vector<8x32xf32>
    %7 = arith.addf %3, %6 : vector<8x32xf32>
    %cst_7 = arith.constant 0.000000e+00 : f32
    %8 = vector.broadcast %cst_7 : f32 to vector<8x32xf32>
    %9 = arith.maximumf %7, %8 : vector<8x32xf32>
    %c1 = arith.constant 1 : index
    %c0_8 = arith.constant 0 : index
    %c0_9 = arith.constant 0 : index
    %10 = vector.load %arg1[%c1, %c0_8, %c0_9] : memref<4x32x32xf32, #tpu.memory_space<vmem>>, vector<1x32x32xf32>
    %11 = vector.shape_cast %10 : vector<1x32x32xf32> to vector<32x32xf32>
    %cst_10 = arith.constant dense<0.000000e+00> : vector<8x32xf32>
    %12 = tpu.matmul %9, %11, %cst_10 {dimension_numbers = #tpu.dot_dimension_numbers<[1], [0], [0], [1], [0, 0, 1, 1], [], []>} : vector<8x32xf32>, vector<32x32xf32>, vector<8x32xf32> -> vector<8x32xf32>
    %c1_11 = arith.constant 1 : index
    %c0_12 = arith.constant 0 : index
    %c0_13 = arith.constant 0 : index
    %13 = vector.load %arg2[%c1_11, %c0_12, %c0_13] : memref<4x1x32xf32, #tpu.memory_space<vmem>>, vector<1x1x32xf32>
    %14 = vector.shape_cast %13 : vector<1x1x32xf32> to vector<1x32xf32>
    %15 = vector.broadcast %14 : vector<1x32xf32> to vector<8x32xf32>
    %16 = arith.addf %12, %15 : vector<8x32xf32>
    %cst_14 = arith.constant 0.000000e+00 : f32
    %17 = vector.broadcast %cst_14 : f32 to vector<8x32xf32>
    %18 = arith.maximumf %16, %17 : vector<8x32xf32>
    %c2 = arith.constant 2 : index
    %c0_15 = arith.constant 0 : index
    %c0_16 = arith.constant 0 : index
    %19 = vector.load %arg1[%c2, %c0_15, %c0_16] : memref<4x32x32xf32, #tpu.memory_space<vmem>>, vector<1x32x32xf32>
    %20 = vector.shape_cast %19 : vector<1x32x32xf32> to vector<32x32xf32>
    %cst_17 = arith.constant dense<0.000000e+00> : vector<8x32xf32>
    %21 = tpu.matmul %18, %20, %cst_17 {dimension_numbers = #tpu.dot_dimension_numbers<[1], [0], [0], [1], [0, 0, 1, 1], [], []>} : vector<8x32xf32>, vector<32x32xf32>, vector<8x32xf32> -> vector<8x32xf32>
    %c2_18 = arith.constant 2 : index
    %c0_19 = arith.constant 0 : index
    %c0_20 = arith.constant 0 : index
    %22 = vector.load %arg2[%c2_18, %c0_19, %c0_20] : memref<4x1x32xf32, #tpu.memory_space<vmem>>, vector<1x1x32xf32>
    %23 = vector.shape_cast %22 : vector<1x1x32xf32> to vector<1x32xf32>
    %24 = vector.broadcast %23 : vector<1x32xf32> to vector<8x32xf32>
    %25 = arith.addf %21, %24 : vector<8x32xf32>
    %cst_21 = arith.constant 0.000000e+00 : f32
    %26 = vector.broadcast %cst_21 : f32 to vector<8x32xf32>
    %27 = arith.maximumf %25, %26 : vector<8x32xf32>
    %c3 = arith.constant 3 : index
    %c0_22 = arith.constant 0 : index
    %c0_23 = arith.constant 0 : index
    %28 = vector.load %arg1[%c3, %c0_22, %c0_23] : memref<4x32x32xf32, #tpu.memory_space<vmem>>, vector<1x32x32xf32>
    %29 = vector.shape_cast %28 : vector<1x32x32xf32> to vector<32x32xf32>
    %cst_24 = arith.constant dense<0.000000e+00> : vector<8x32xf32>
    %30 = tpu.matmul %27, %29, %cst_24 {dimension_numbers = #tpu.dot_dimension_numbers<[1], [0], [0], [1], [0, 0, 1, 1], [], []>} : vector<8x32xf32>, vector<32x32xf32>, vector<8x32xf32> -> vector<8x32xf32>
    %c3_25 = arith.constant 3 : index
    %c0_26 = arith.constant 0 : index
    %c0_27 = arith.constant 0 : index
    %31 = vector.load %arg2[%c3_25, %c0_26, %c0_27] : memref<4x1x32xf32, #tpu.memory_space<vmem>>, vector<1x1x32xf32>
    %32 = vector.shape_cast %31 : vector<1x1x32xf32> to vector<1x32xf32>
    %33 = vector.broadcast %32 : vector<1x32xf32> to vector<8x32xf32>
    %34 = arith.addf %30, %33 : vector<8x32xf32>
    %cst_28 = arith.constant 0.000000e+00 : f32
    %35 = vector.broadcast %cst_28 : f32 to vector<8x32xf32>
    %36 = arith.maximumf %34, %35 : vector<8x32xf32>
    %37 = vector.extract_strided_slice %36 {offsets = [0, 0], sizes = [8, 8], strides = [1, 1]} : vector<8x32xf32> to vector<8x8xf32>
    %c0_29 = arith.constant 0 : index
    %c0_30 = arith.constant 0 : index
    %38 = vector.load %arg3[%c0_29, %c0_30] : memref<8x8xf32, #tpu.memory_space<vmem>>, vector<8x8xf32>
    tpu.vector_store %arg3[%c0_29, %c0_30], %37 {strides = array<i32>} : memref<8x8xf32, #tpu.memory_space<vmem>>, vector<8x8xf32>,
    return
  }
}

</mosaic_0001>

<llo_original>
// kernel: tpu_custom_call.1
$region0: #{tpu_custom_call.1}
  #allocation0 [shape = 'u32[]', space=smem, size = 0x4, offset = 0x4, fixed_abs, tag = 'smem constant byte address 0x4 - core index']
  #allocation1 [shape = 'u32[72,128]{1,0:T(1,128)}', space=vmem, size = 0x9000, scoped, tag = 'internal scratch']
  %s0 = inlined_call_operand.hbm [shape: f32[8,16], index: 0, kind: input, shape index: {}]
  %s1 = inlined_call_operand.hbm [shape: f32[4,32,32], index: 1, kind: input, shape index: {}]
  %s2 = inlined_call_operand.hbm [shape: f32[4,1,32], index: 2, kind: input, shape index: {}]
  %s3 = inlined_call_operand.hbm [shape: f32[8,8], index: 3, kind: output, shape index: {}]
  %s4 = sld [smem:[#allocation0]]
  $region34: #{tpu_custom_call.1} parent=0
    _
  %s6 = ssub.s32 1, %s4
  %s7 = scalar_select 0, %s6, %s4
  $region1: #{tpu_custom_call.1} parent=0
    #allocation2 [shape = 'u8[4096]{0}', space=vmem, size = 0x1000, scoped, tag = 'input window, operand 0, single buffered']
    #allocation3 [shape = 's32[1]{0}', space=sflag, size = 0x4, scoped, tag = 'scoped memory for tpu_custom_call.1']
    #allocation4 [shape = 's32[1]{0}', space=sflag, size = 0x4, scoped, tag = 'scoped memory for tpu_custom_call.1']
    #allocation5 [shape = 'u8[65536]{0}', space=vmem, size = 0x10000, scoped, tag = 'input window, operand 1, single buffered']
    #allocation6 [shape = 's32[1]{0}', space=sflag, size = 0x4, scoped, tag = 'scoped memory for tpu_custom_call.1']
    #allocation7 [shape = 'u8[2048]{0}', space=vmem, size = 0x800, scoped, tag = 'input window, operand 2, single buffered']
    #allocation8 [shape = 'u8[4096]{0}', space=vmem, size = 0x1000, scoped, tag = 'output window, operand 0, single buffered']
    %8 = vsyncpa [#allocation3], 0
    %9 = vsyncpa [#allocation6], 0
    %10 = vsyncpa [#allocation4], 0
    // Predicated region
    $region2: #{tpu_custom_call.1} parent=1 // pred_check
      _
    $region3: #{tpu_custom_call.1} parent=1 // pred_check_branch
      %12 = sbr.rel (0) target = $region5
    $region4: #{tpu_custom_call.1} parent=1 // pred_region
      %14 = vsyncadd [#allocation3], 0
      %s16 = sshll.u32 %s0, 4
      %s17 = int_to_ptr.hbm [resolvable:$true] %s16
      %s18 = sshll.u32 [#allocation2], 4
      %s19 = int_to_ptr.vmem [resolvable:$true] %s18
      %21 = dma.hbm_to_vmem [thread:$0]  %s17, 128, %s19, [#allocation3]
    $region5: #{tpu_custom_call.1} parent=1 // pred_fallthru
      _
    // Predicated region
    $region6: #{tpu_custom_call.1} parent=1 // pred_check
      _
    $region7: #{tpu_custom_call.1} parent=1 // pred_check_branch
      %23 = sbr.rel (0) target = $region9
    $region8: #{tpu_custom_call.1} parent=1 // pred_region
      %25 = vsyncadd [#allocation6], 0
      %s26 = sshll.u32 %s1, 4
      %s27 = int_to_ptr.hbm [resolvable:$true] %s26
      %s28 = sshll.u32 [#allocation5], 4
      %s29 = int_to_ptr.vmem [resolvable:$true] %s28
      %34 = dma.hbm_to_vmem [thread:$0]  %s27, 2048, %s29, [#allocation6], 128, 128, 8
    $region9: #{tpu_custom_call.1} parent=1 // pred_fallthru
      _
    // Predicated region
    $region10: #{tpu_custom_call.1} parent=1 // pred_check
      _
    $region11: #{tpu_custom_call.1} parent=1 // pred_check_branch
      %36 = sbr.rel (0) target = $region13
    $region12: #{tpu_custom_call.1} parent=1 // pred_region
      %38 = vsyncadd [#allocation6], 0
      %s39 = sshll.u32 %s2, 4
      %s40 = int_to_ptr.hbm [resolvable:$true] %s39
      %s41 = sshll.u32 [#allocation7], 4
      %s42 = int_to_ptr.vmem [resolvable:$true] %s41
      %47 = dma.hbm_to_vmem [thread:$0]  %s40, 64, %s42, [#allocation6], 16, 16, 1
    $region13: #{tpu_custom_call.1} parent=1 // pred_fallthru
      _
    // Predicated region
    $region14: #{tpu_custom_call.1} parent=1 // pred_check
      _
    $region15: #{tpu_custom_call.1} parent=1 // pred_check_branch
      %49 = sbr.rel (0) target = $region17
    $region16: #{tpu_custom_call.1} parent=1 // pred_region
      %51 = dma.done [#allocation3], 128
    $region17: #{tpu_custom_call.1} parent=1 // pred_fallthru
      _
    // Predicated region
    $region18: #{tpu_custom_call.1} parent=1 // pred_check
      _
    $region19: #{tpu_custom_call.1} parent=1 // pred_check_branch
      %53 = sbr.rel (0) target = $region21
    $region20: #{tpu_custom_call.1} parent=1 // pred_region
      %55 = dma.done [#allocation6], 2048
    $region21: #{tpu_custom_call.1} parent=1 // pred_fallthru
      _
    // Predicated region
    $region22: #{tpu_custom_call.1} parent=1 // pred_check
      _
    $region23: #{tpu_custom_call.1} parent=1 // pred_check_branch
      %57 = sbr.rel (0) target = $region25
    $region24: #{tpu_custom_call.1} parent=1 // pred_region
      %59 = dma.done [#allocation6], 64
    $region25: #{tpu_custom_call.1} parent=1 // pred_fallthru
      _
    %v60 = vld [vmem:[#allocation2] sm:$0xff]
    %v61 = vld [vmem:[#allocation5] sm:$0xff]
    %v62 = vld [vmem:[#allocation5 + $0x8] sm:$0xff]
    %v63 = vld [vmem:[#allocation7] sm:$0x1]
    %v65 = vperm.slane %v63, 0
    %vm67 = vcmask 130048
    %v69 = vsel %vm67, %v60, 0
    %71 = vmatpush.msra.mxu0 0.0
    %72 = vmatpush.msra.mxu0 0.0
    %73 = vmatpush.msra.mxu0 0.0
    %74 = vmatpush.msra.mxu0 0.0
    %75 = vmatpush.msra.mxu0 0.0
    %76 = vmatpush.msra.mxu0 0.0
    %77 = vmatpush.msra.mxu0 0.0
    %78 = vmatpush.msra.mxu0 0.0
    %79 = vmatpush.msra.mxu0 0.0
    %80 = vmatpush.msra.mxu0 0.0
    %81 = vmatpush.msra.mxu0 0.0
    %82 = vmatpush.msra.mxu0 0.0
    %83 = vmatpush.msra.mxu0 0.0
    %84 = vmatpush.msra.mxu0 0.0
    %85 = vmatpush.msra.mxu0 %v62
    %86 = vmatpush.msra.mxu0 %v61
    %87 = vmatmul.f32.gmra.mxu0 %v69
    %v88 = vpop.f32.mrf.mxu0
    %v89 = vadd.f32 %v65, %v88
    %90 = vdwg.mxu0
    %v91 = vmax.f32 %v89, 0.0
    %s92 = scalar_lea.vmem [#allocation5], 32
    %v93 = vld [vmem:[%s92] sm:$0xff]
    %v94 = vld [vmem:[%s92 + $0x8] sm:$0xff]
    %v95 = vld [vmem:[%s92 + $0x10] sm:$0xff]
    %v96 = vld [vmem:[%s92 + $0x18] sm:$0xff]
    %s97 = scalar_lea.vmem [#allocation7], 1
    %v98 = vld [vmem:[%s97] sm:$0x1]
    %v100 = vperm.slane %v98, 0
    %vm102 = vcmask 261120
    %v104 = vsel %vm102, %v91, 0
    %106 = vmatpush.msra.mxu0 0.0
    %107 = vmatpush.msra.mxu0 0.0
    %108 = vmatpush.msra.mxu0 0.0
    %109 = vmatpush.msra.mxu0 0.0
    %110 = vmatpush.msra.mxu0 0.0
    %111 = vmatpush.msra.mxu0 0.0
    %112 = vmatpush.msra.mxu0 0.0
    %113 = vmatpush.msra.mxu0 0.0
    %114 = vmatpush.msra.mxu0 0.0
    %115 = vmatpush.msra.mxu0 0.0
    %116 = vmatpush.msra.mxu0 0.0
    %117 = vmatpush.msra.mxu0 0.0
    %118 = vmatpush.msra.mxu0 %v96
    %119 = vmatpush.msra.mxu0 %v95
    %120 = vmatpush.msra.mxu0 %v94
    %121 = vmatpush.msra.mxu0 %v93
    %122 = vmatmul.f32.gmra.mxu0 %v104
    %v123 = vpop.f32.mrf.mxu0
    %v124 = vadd.f32 %v100, %v123
    %125 = vdwg.mxu0
    %v126 = vmax.f32 %v124, 0.0
    %s127 = scalar_lea.vmem [#allocation5], 64
    %v128 = vld [vmem:[%s127] sm:$0xff]
    %v129 = vld [vmem:[%s127 + $0x8] sm:$0xff]
    %v130 = vld [vmem:[%s127 + $0x10] sm:$0xff]
    %v131 = vld [vmem:[%s127 + $0x18] sm:$0xff]
    %s132 = scalar_lea.vmem [#allocation7], 2
    %v133 = vld [vmem:[%s132] sm:$0x1]
    %v135 = vperm.slane %v133, 0
    %v138 = vsel %vm102, %v126, 0
    %140 = vmatpush.msra.mxu0 0.0
    %141 = vmatpush.msra.mxu0 0.0
    %142 = vmatpush.msra.mxu0 0.0
    %143 = vmatpush.msra.mxu0 0.0
    %144 = vmatpush.msra.mxu0 0.0
    %145 = vmatpush.msra.mxu0 0.0
    %146 = vmatpush.msra.mxu0 0.0
    %147 = vmatpush.msra.mxu0 0.0
    %148 = vmatpush.msra.mxu0 0.0
    %149 = vmatpush.msra.mxu0 0.0
    %150 = vmatpush.msra.mxu0 0.0
    %151 = vmatpush.msra.mxu0 0.0
    %152 = vmatpush.msra.mxu0 %v131
    %153 = vmatpush.msra.mxu0 %v130
    %154 = vmatpush.msra.mxu0 %v129
    %155 = vmatpush.msra.mxu0 %v128
    %156 = vmatmul.f32.gmra.mxu0 %v138
    %v157 = vpop.f32.mrf.mxu0
    %v158 = vadd.f32 %v135, %v157
    %159 = vdwg.mxu0
    %v160 = vmax.f32 %v158, 0.0
    %s161 = scalar_lea.vmem [#allocation5], 96
    %v162 = vld [vmem:[%s161] sm:$0xff]
    %v163 = vld [vmem:[%s161 + $0x8] sm:$0xff]
    %v164 = vld [vmem:[%s161 + $0x10] sm:$0xff]
    %v165 = vld [vmem:[%s161 + $0x18] sm:$0xff]
    %s166 = scalar_lea.vmem [#allocation7], 3
    %v167 = vld [vmem:[%s166] sm:$0x1]
    %v169 = vperm.slane %v167, 0
    %v172 = vsel %vm102, %v160, 0
    %174 = vmatpush.msra.mxu0 0.0
    %175 = vmatpush.msra.mxu0 0.0
    %176 = vmatpush.msra.mxu0 0.0
    %177 = vmatpush.msra.mxu0 0.0
    %178 = vmatpush.msra.mxu0 0.0
    %179 = vmatpush.msra.mxu0 0.0
    %180 = vmatpush.msra.mxu0 0.0
    %181 = vmatpush.msra.mxu0 0.0
    %182 = vmatpush.msra.mxu0 0.0
    %183 = vmatpush.msra.mxu0 0.0
    %184 = vmatpush.msra.mxu0 0.0
    %185 = vmatpush.msra.mxu0 0.0
    %186 = vmatpush.msra.mxu0 %v165
    %187 = vmatpush.msra.mxu0 %v164
    %188 = vmatpush.msra.mxu0 %v163
    %189 = vmatpush.msra.mxu0 %v162
    %190 = vmatmul.f32.gmra.mxu0 %v172
    %v191 = vpop.f32.mrf.mxu0
    %v192 = vadd.f32 %v169, %v191
    %193 = vdwg.mxu0
    %v194 = vmax.f32 %v192, 0.0
    %vm195 = vcmask 64512
    %196 = vst.msk [vmem:[#allocation8] sm:$0xff] %vm195, %v194
    // Predicated region
    $region26: #{tpu_custom_call.1} parent=1 // pred_check
      _
    $region27: #{tpu_custom_call.1} parent=1 // pred_check_branch
      %198 = sbr.rel (0) target = $region29
    $region28: #{tpu_custom_call.1} parent=1 // pred_region
      %200 = vsyncadd [#allocation4], 0
      %s202 = sshll.u32 [#allocation8], 4
      %s203 = int_to_ptr.vmem [resolvable:$true] %s202
      %s204 = sshll.u32 %s3, 4
      %s205 = int_to_ptr.hbm [resolvable:$true] %s204
      %207 = dma.vmem_to_hbm [thread:$0]  %s203, 128, %s205, [#allocation4]
    $region29: #{tpu_custom_call.1} parent=1 // pred_fallthru
      _
    // Predicated region
    $region30: #{tpu_custom_call.1} parent=1 // pred_check
      _
    $region31: #{tpu_custom_call.1} parent=1 // pred_check_branch
      %209 = sbr.rel (0) target = $region33
    $region32: #{tpu_custom_call.1} parent=1 // pred_region
      %211 = dma.done [#allocation4], 128
    $region33: #{tpu_custom_call.1} parent=1 // pred_fallthru
      _
    %212 = vsyncpa [#allocation3], 1
    %213 = vsyncpa [#allocation6], 1
    %214 = vsyncpa [#allocation4], 1

</llo_original>
